<compile_context>
chip_gen: v7x
topology: tpu7x:2x2x1
jax: 0.10.0
libtpu: 0.0.40
codegen_flags: <defaults>
</compile_context>

<pallas_src>
from functools import partial

import jax
import jax.numpy as jnp
from jax.experimental import pallas as pl
from jax.experimental.pallas import tpu as pltpu


def _lstm_kernel(x_ref, wih_ref, whh_ref, b_ref, dseq_ref, hn_ref, cn_ref):
    """Single-invocation LSTM forward with zero initial state.

    x_ref    : (T*B, D)   time-major flattened inputs (row = t*B + b)
    wih_ref  : (D, 4H)    W_ih^T   (f32 or bf16)
    whh_ref  : (H, 4H)    W_hh^T   (f32 or bf16)
    b_ref    : (1, 4H)    b_ih + b_hh (f32)
    dseq_ref : (B, T*H)   lane-dense hidden-sequence output (batch_first after reshape)
    hn_ref   : (B, H)     final hidden state
    cn_ref   : (B, H)     final cell state
    """
    B, H = hn_ref.shape
    T = dseq_ref.shape[1] // H

    # ---- hoisted input projection: one MXU matmul covers all T steps ----
    gx = jnp.dot(x_ref[...], wih_ref[...],
                 preferred_element_type=jnp.float32) + b_ref[...]      # (T*B, 4H) f32

    whh = whh_ref[...]          # loaded once; loop-invariant MXU RHS
    mm_dtype = whh.dtype        # f32 (default) or bf16 (use_bf16_matmul)

    h = jnp.zeros((B, H), jnp.float32)
    c = jnp.zeros((B, H), jnp.float32)
    hs = []

    # ---- fully unrolled recurrence: straight-line code, static slices ----
    for t in range(T):
        gx_t = gx[t * B:(t + 1) * B, :]                                # contiguous rows
        gates = gx_t + jnp.dot(h.astype(mm_dtype), whh,
                               preferred_element_type=jnp.float32)     # (B, 4H)
        sg = jax.nn.sigmoid(gates)                # i/f/o need sigmoid -> one 4H pass
        # PyTorch gate order: i, f, g, o
        i_g = sg[:, 0 * H:1 * H]
        f_g = sg[:, 1 * H:2 * H]
        o_g = sg[:, 3 * H:4 * H]
        g_g = jnp.tanh(gates[:, 2 * H:3 * H])     # tanh only on the H-wide g slice

        c = f_g * c + i_g * g_g
        h = o_g * jnp.tanh(c)
        hs.append(h)

    # ---- single lane-dense store of the whole sequence, states written once ----
    dseq_ref[...] = jnp.concatenate(hs, axis=1).astype(dseq_ref.dtype)  # (B, T*H)
    hn_ref[...] = h.astype(hn_ref.dtype)
    cn_ref[...] = c.astype(cn_ref.dtype)


@partial(jax.jit, static_argnames=("use_bf16_matmul",))
def decoder_rnn_forward(h_seq, w_ih, w_hh, b_ih, b_hh, use_bf16_matmul=False):
    """Matches torch.nn.LSTM(hidden_dim, latent_dim, num_layers=1,
    batch_first=True) forward with zero initial state.

    h_seq : (B, T, D) ; w_ih : (4H, D) ; w_hh : (4H, H) ; b_ih/b_hh : (4H,)
    returns (d_seq (B, T, H), (d_n (1, B, H), c_n (1, B, H)))
    """
    B, T, D = h_seq.shape
    H = w_hh.shape[1]
    dtype = h_seq.dtype
    mm_dtype = jnp.bfloat16 if use_bf16_matmul else jnp.float32

    # Time-major flatten: step t reads contiguous rows [t*B, (t+1)*B).
    x_tm = jnp.transpose(h_seq, (1, 0, 2)).reshape(T * B, D).astype(mm_dtype)
    wih_t = jnp.transpose(w_ih).astype(mm_dtype)        # (D, 4H)
    whh_t = jnp.transpose(w_hh).astype(mm_dtype)        # (H, 4H)
    bias = (b_ih + b_hh).reshape(1, 4 * H).astype(jnp.float32)

    vmem = pl.BlockSpec(memory_space=pltpu.MemorySpace.VMEM)   # whole-array VMEM block

    cost = pl.CostEstimate(
        flops=2 * T * B * D * 4 * H      # hoisted input projection
              + 2 * T * B * H * 4 * H    # recurrent matmuls
              + 10 * T * B * H,          # gate/state elementwise
        transcendentals=T * B * (4 * H + 2 * H),   # sigmoid(4H) + tanh(g) + tanh(c)
        bytes_accessed=(x_tm.size + wih_t.size + whh_t.size) * x_tm.dtype.itemsize
                       + bias.size * 4
                       + (B * T * H + 2 * B * H) * dtype.itemsize,
    )

    d_flat, h_n, c_n = pl.pallas_call(
        _lstm_kernel,
        out_shape=(
            jax.ShapeDtypeStruct((B, T * H), dtype),   # lane-dense d_seq slab
            jax.ShapeDtypeStruct((B, H), dtype),       # h_n
            jax.ShapeDtypeStruct((B, H), dtype),       # c_n
        ),
        in_specs=[vmem, vmem, vmem, vmem],
        out_specs=(vmem, vmem, vmem),
        cost_estimate=cost,
        # No grid: single invocation, all operands resident in VMEM.
    )(x_tm, wih_t, whh_t, bias)

    d_seq = d_flat.reshape(B, T, H)                    # free contiguous reshape
    # nn.LSTM returns (num_layers=1, B, H) states; leading-dim expand is free.
    return d_seq, (h_n[None], c_n[None])


def _reference_lstm(h_seq, w_ih, w_hh, b_ih, b_hh):
    """Pure-JAX reference (same semantics as torch.nn.LSTM, zero init state)."""
    B, T, D = h_seq.shape
    H = w_hh.shape[1]

    def step(carry, x_t):
        h, c = carry
        gates = x_t @ w_ih.T + h @ w_hh.T + b_ih + b_hh
        i = jax.nn.sigmoid(gates[:, 0 * H:1 * H])
        f = jax.nn.sigmoid(gates[:, 1 * H:2 * H])
        g = jnp.tanh(gates[:, 2 * H:3 * H])
        o = jax.nn.sigmoid(gates[:, 3 * H:4 * H])
        c_new = f * c + i * g
        h_new = o * jnp.tanh(c_new)
        return (h_new, c_new), h_new

    init = (jnp.zeros((B, H), jnp.float32), jnp.zeros((B, H), jnp.float32))
    (h_n, c_n), ys = jax.lax.scan(step, init, jnp.transpose(h_seq, (1, 0, 2)))
    return jnp.transpose(ys, (1, 0, 2)), (h_n[None], c_n[None])


if __name__ == "__main__":
    hidden_dim = 32    # LSTM input size
    latent_dim = 32    # LSTM hidden size
    B, T = 2, 8

    key = jax.random.PRNGKey(0)
    k_x, k_wih, k_whh, k_bih, k_bhh = jax.random.split(key, 5)

    scale = 1.0 / jnp.sqrt(latent_dim)   # mimic PyTorch uniform(-1/sqrt(H), 1/sqrt(H))
    h_seq = jax.random.normal(k_x, (B, T, hidden_dim), dtype=jnp.float32)
    w_ih = jax.random.uniform(k_wih, (4 * latent_dim, hidden_dim),
                              minval=-scale, maxval=scale, dtype=jnp.float32)
    w_hh = jax.random.uniform(k_whh, (4 * latent_dim, latent_dim),
                              minval=-scale, maxval=scale, dtype=jnp.float32)
    b_ih = jax.random.uniform(k_bih, (4 * latent_dim,),
                              minval=-scale, maxval=scale, dtype=jnp.float32)
    b_hh = jax.random.uniform(k_bhh, (4 * latent_dim,),
                              minval=-scale, maxval=scale, dtype=jnp.float32)

    d_seq, (d_n, c_n) = decoder_rnn_forward(h_seq, w_ih, w_hh, b_ih, b_hh)
    jax.block_until_ready((d_seq, d_n, c_n))

    # correctness check against pure-JAX reference (f32 path, tight tolerance)
    ref_seq, (ref_dn, ref_cn) = _reference_lstm(h_seq, w_ih, w_hh, b_ih, b_hh)
    assert d_seq.shape == (B, T, latent_dim)
    assert d_n.shape == (1, B, latent_dim) and c_n.shape == (1, B, latent_dim)
    assert jnp.allclose(d_seq, ref_seq, atol=3e-5), "d_seq mismatch"
    assert jnp.allclose(d_n, ref_dn, atol=3e-5), "d_n mismatch"
    assert jnp.allclose(c_n, ref_cn, atol=3e-5), "c_n mismatch"

    print("KERNEL_OK")
</pallas_src>

<mosaic_0001>
module attributes {stable_mosaic.version = 11 : i64} {
  func.func @_lstm_kernel(%arg0: memref<16x32xf32, #tpu.memory_space<vmem>>, %arg1: memref<32x128xf32, #tpu.memory_space<vmem>>, %arg2: memref<32x128xf32, #tpu.memory_space<vmem>>, %arg3: memref<1x128xf32, #tpu.memory_space<vmem>>, %arg4: memref<2x256xf32, #tpu.memory_space<vmem>>, %arg5: memref<2x32xf32, #tpu.memory_space<vmem>>, %arg6: memref<2x32xf32, #tpu.memory_space<vmem>>) attributes {dimension_semantics = [], scalar_prefetch = 0 : i64, scratch_operands = 0 : i64, tpu.core_type = #tpu.core_type<tc>} {
    %c0 = arith.constant 0 : index
    %c0_0 = arith.constant 0 : index
    %0 = vector.load %arg0[%c0, %c0_0] : memref<16x32xf32, #tpu.memory_space<vmem>>, vector<16x32xf32>
    %c0_1 = arith.constant 0 : index
    %c0_2 = arith.constant 0 : index
    %1 = vector.load %arg1[%c0_1, %c0_2] : memref<32x128xf32, #tpu.memory_space<vmem>>, vector<32x128xf32>
    %cst = arith.constant dense<0.000000e+00> : vector<16x128xf32>
    %2 = tpu.matmul %0, %1, %cst {dimension_numbers = #tpu.dot_dimension_numbers<[1], [0], [0], [1], [0, 0, 1, 1], [], []>} : vector<16x32xf32>, vector<32x128xf32>, vector<16x128xf32> -> vector<16x128xf32>
    %c0_3 = arith.constant 0 : index
    %c0_4 = arith.constant 0 : index
    %3 = vector.load %arg3[%c0_3, %c0_4] : memref<1x128xf32, #tpu.memory_space<vmem>>, vector<1x128xf32>
    %4 = vector.broadcast %3 : vector<1x128xf32> to vector<16x128xf32>
    %5 = arith.addf %2, %4 : vector<16x128xf32>
    %c0_5 = arith.constant 0 : index
    %c0_6 = arith.constant 0 : index
    %6 = vector.load %arg2[%c0_5, %c0_6] : memref<32x128xf32, #tpu.memory_space<vmem>>, vector<32x128xf32>
    %cst_7 = arith.constant 0.000000e+00 : f32
    %7 = vector.broadcast %cst_7 : f32 to vector<2x32xf32>
    %cst_8 = arith.constant 0.000000e+00 : f32
    %8 = vector.broadcast %cst_8 : f32 to vector<2x32xf32>
    %9 = vector.extract_strided_slice %5 {offsets = [0, 0], sizes = [2, 128], strides = [1, 1]} : vector<16x128xf32> to vector<2x128xf32>
    %cst_9 = arith.constant dense<0.000000e+00> : vector<2x128xf32>
    %10 = tpu.matmul %7, %6, %cst_9 {dimension_numbers = #tpu.dot_dimension_numbers<[1], [0], [0], [1], [0, 0, 1, 1], [], []>} : vector<2x32xf32>, vector<32x128xf32>, vector<2x128xf32> -> vector<2x128xf32>
    %11 = arith.addf %9, %10 : vector<2x128xf32>
    %12 = arith.negf %11 : vector<2x128xf32>
    %13 = math.exp %12 : vector<2x128xf32>
    %cst_10 = arith.constant 1.000000e+00 : f32
    %14 = vector.broadcast %cst_10 : f32 to vector<2x128xf32>
    %15 = arith.addf %14, %13 : vector<2x128xf32>
    %16 = arith.divf %14, %15 : vector<2x128xf32>
    %17 = vector.extract_strided_slice %16 {offsets = [0, 0], sizes = [2, 32], strides = [1, 1]} : vector<2x128xf32> to vector<2x32xf32>
    %18 = vector.extract_strided_slice %16 {offsets = [0, 32], sizes = [2, 32], strides = [1, 1]} : vector<2x128xf32> to vector<2x32xf32>
    %19 = vector.extract_strided_slice %16 {offsets = [0, 96], sizes = [2, 32], strides = [1, 1]} : vector<2x128xf32> to vector<2x32xf32>
    %20 = vector.extract_strided_slice %11 {offsets = [0, 64], sizes = [2, 32], strides = [1, 1]} : vector<2x128xf32> to vector<2x32xf32>
    %21 = math.tanh %20 : vector<2x32xf32>
    %22 = arith.mulf %18, %8 : vector<2x32xf32>
    %23 = arith.mulf %17, %21 : vector<2x32xf32>
    %24 = arith.addf %22, %23 : vector<2x32xf32>
    %25 = math.tanh %24 : vector<2x32xf32>
    %26 = arith.mulf %19, %25 : vector<2x32xf32>
    %27 = vector.extract_strided_slice %5 {offsets = [2, 0], sizes = [2, 128], strides = [1, 1]} : vector<16x128xf32> to vector<2x128xf32>
    %cst_11 = arith.constant dense<0.000000e+00> : vector<2x128xf32>
    %28 = tpu.matmul %26, %6, %cst_11 {dimension_numbers = #tpu.dot_dimension_numbers<[1], [0], [0], [1], [0, 0, 1, 1], [], []>} : vector<2x32xf32>, vector<32x128xf32>, vector<2x128xf32> -> vector<2x128xf32>
    %29 = arith.addf %27, %28 : vector<2x128xf32>
    %30 = arith.negf %29 : vector<2x128xf32>
    %31 = math.exp %30 : vector<2x128xf32>
    %cst_12 = arith.constant 1.000000e+00 : f32
    %32 = vector.broadcast %cst_12 : f32 to vector<2x128xf32>
    %33 = arith.addf %32, %31 : vector<2x128xf32>
    %34 = arith.divf %32, %33 : vector<2x128xf32>
    %35 = vector.extract_strided_slice %34 {offsets = [0, 0], sizes = [2, 32], strides = [1, 1]} : vector<2x128xf32> to vector<2x32xf32>
    %36 = vector.extract_strided_slice %34 {offsets = [0, 32], sizes = [2, 32], strides = [1, 1]} : vector<2x128xf32> to vector<2x32xf32>
    %37 = vector.extract_strided_slice %34 {offsets = [0, 96], sizes = [2, 32], strides = [1, 1]} : vector<2x128xf32> to vector<2x32xf32>
    %38 = vector.extract_strided_slice %29 {offsets = [0, 64], sizes = [2, 32], strides = [1, 1]} : vector<2x128xf32> to vector<2x32xf32>
    %39 = math.tanh %38 : vector<2x32xf32>
    %40 = arith.mulf %36, %24 : vector<2x32xf32>
    %41 = arith.mulf %35, %39 : vector<2x32xf32>
    %42 = arith.addf %40, %41 : vector<2x32xf32>
    %43 = math.tanh %42 : vector<2x32xf32>
    %44 = arith.mulf %37, %43 : vector<2x32xf32>
    %45 = vector.extract_strided_slice %5 {offsets = [4, 0], sizes = [2, 128], strides = [1, 1]} : vector<16x128xf32> to vector<2x128xf32>
    %cst_13 = arith.constant dense<0.000000e+00> : vector<2x128xf32>
    %46 = tpu.matmul %44, %6, %cst_13 {dimension_numbers = #tpu.dot_dimension_numbers<[1], [0], [0], [1], [0, 0, 1, 1], [], []>} : vector<2x32xf32>, vector<32x128xf32>, vector<2x128xf32> -> vector<2x128xf32>
    %47 = arith.addf %45, %46 : vector<2x128xf32>
    %48 = arith.negf %47 : vector<2x128xf32>
    %49 = math.exp %48 : vector<2x128xf32>
    %cst_14 = arith.constant 1.000000e+00 : f32
    %50 = vector.broadcast %cst_14 : f32 to vector<2x128xf32>
    %51 = arith.addf %50, %49 : vector<2x128xf32>
    %52 = arith.divf %50, %51 : vector<2x128xf32>
    %53 = vector.extract_strided_slice %52 {offsets = [0, 0], sizes = [2, 32], strides = [1, 1]} : vector<2x128xf32> to vector<2x32xf32>
    %54 = vector.extract_strided_slice %52 {offsets = [0, 32], sizes = [2, 32], strides = [1, 1]} : vector<2x128xf32> to vector<2x32xf32>
    %55 = vector.extract_strided_slice %52 {offsets = [0, 96], sizes = [2, 32], strides = [1, 1]} : vector<2x128xf32> to vector<2x32xf32>
    %56 = vector.extract_strided_slice %47 {offsets = [0, 64], sizes = [2, 32], strides = [1, 1]} : vector<2x128xf32> to vector<2x32xf32>
    %57 = math.tanh %56 : vector<2x32xf32>
    %58 = arith.mulf %54, %42 : vector<2x32xf32>
    %59 = arith.mulf %53, %57 : vector<2x32xf32>
    %60 = arith.addf %58, %59 : vector<2x32xf32>
    %61 = math.tanh %60 : vector<2x32xf32>
    %62 = arith.mulf %55, %61 : vector<2x32xf32>
    %63 = vector.extract_strided_slice %5 {offsets = [6, 0], sizes = [2, 128], strides = [1, 1]} : vector<16x128xf32> to vector<2x128xf32>
    %cst_15 = arith.constant dense<0.000000e+00> : vector<2x128xf32>
    %64 = tpu.matmul %62, %6, %cst_15 {dimension_numbers = #tpu.dot_dimension_numbers<[1], [0], [0], [1], [0, 0, 1, 1], [], []>} : vector<2x32xf32>, vector<32x128xf32>, vector<2x128xf32> -> vector<2x128xf32>
    %65 = arith.addf %63, %64 : vector<2x128xf32>
    %66 = arith.negf %65 : vector<2x128xf32>
    %67 = math.exp %66 : vector<2x128xf32>
    %cst_16 = arith.constant 1.000000e+00 : f32
    %68 = vector.broadcast %cst_16 : f32 to vector<2x128xf32>
    %69 = arith.addf %68, %67 : vector<2x128xf32>
    %70 = arith.divf %68, %69 : vector<2x128xf32>
    %71 = vector.extract_strided_slice %70 {offsets = [0, 0], sizes = [2, 32], strides = [1, 1]} : vector<2x128xf32> to vector<2x32xf32>
    %72 = vector.extract_strided_slice %70 {offsets = [0, 32], sizes = [2, 32], strides = [1, 1]} : vector<2x128xf32> to vector<2x32xf32>
    %73 = vector.extract_strided_slice %70 {offsets = [0, 96], sizes = [2, 32], strides = [1, 1]} : vector<2x128xf32> to vector<2x32xf32>
    %74 = vector.extract_strided_slice %65 {offsets = [0, 64], sizes = [2, 32], strides = [1, 1]} : vector<2x128xf32> to vector<2x32xf32>
    %75 = math.tanh %74 : vector<2x32xf32>
    %76 = arith.mulf %72, %60 : vector<2x32xf32>
    %77 = arith.mulf %71, %75 : vector<2x32xf32>
    %78 = arith.addf %76, %77 : vector<2x32xf32>
    %79 = math.tanh %78 : vector<2x32xf32>
    %80 = arith.mulf %73, %79 : vector<2x32xf32>
    %81 = vector.extract_strided_slice %5 {offsets = [8, 0], sizes = [2, 128], strides = [1, 1]} : vector<16x128xf32> to vector<2x128xf32>
    %cst_17 = arith.constant dense<0.000000e+00> : vector<2x128xf32>
    %82 = tpu.matmul %80, %6, %cst_17 {dimension_numbers = #tpu.dot_dimension_numbers<[1], [0], [0], [1], [0, 0, 1, 1], [], []>} : vector<2x32xf32>, vector<32x128xf32>, vector<2x128xf32> -> vector<2x128xf32>
    %83 = arith.addf %81, %82 : vector<2x128xf32>
    %84 = arith.negf %83 : vector<2x128xf32>
    %85 = math.exp %84 : vector<2x128xf32>
    %cst_18 = arith.constant 1.000000e+00 : f32
    %86 = vector.broadcast %cst_18 : f32 to vector<2x128xf32>
    %87 = arith.addf %86, %85 : vector<2x128xf32>
    %88 = arith.divf %86, %87 : vector<2x128xf32>
    %89 = vector.extract_strided_slice %88 {offsets = [0, 0], sizes = [2, 32], strides = [1, 1]} : vector<2x128xf32> to vector<2x32xf32>
    %90 = vector.extract_strided_slice %88 {offsets = [0, 32], sizes = [2, 32], strides = [1, 1]} : vector<2x128xf32> to vector<2x32xf32>
    %91 = vector.extract_strided_slice %88 {offsets = [0, 96], sizes = [2, 32], strides = [1, 1]} : vector<2x128xf32> to vector<2x32xf32>
    %92 = vector.extract_strided_slice %83 {offsets = [0, 64], sizes = [2, 32], strides = [1, 1]} : vector<2x128xf32> to vector<2x32xf32>
    %93 = math.tanh %92 : vector<2x32xf32>
    %94 = arith.mulf %90, %78 : vector<2x32xf32>
    %95 = arith.mulf %89, %93 : vector<2x32xf32>
    %96 = arith.addf %94, %95 : vector<2x32xf32>
    %97 = math.tanh %96 : vector<2x32xf32>
    %98 = arith.mulf %91, %97 : vector<2x32xf32>
    %99 = vector.extract_strided_slice %5 {offsets = [10, 0], sizes = [2, 128], strides = [1, 1]} : vector<16x128xf32> to vector<2x128xf32>
    %cst_19 = arith.constant dense<0.000000e+00> : vector<2x128xf32>
    %100 = tpu.matmul %98, %6, %cst_19 {dimension_numbers = #tpu.dot_dimension_numbers<[1], [0], [0], [1], [0, 0, 1, 1], [], []>} : vector<2x32xf32>, vector<32x128xf32>, vector<2x128xf32> -> vector<2x128xf32>
    %101 = arith.addf %99, %100 : vector<2x128xf32>
    %102 = arith.negf %101 : vector<2x128xf32>
    %103 = math.exp %102 : vector<2x128xf32>
    %cst_20 = arith.constant 1.000000e+00 : f32
    %104 = vector.broadcast %cst_20 : f32 to vector<2x128xf32>
    %105 = arith.addf %104, %103 : vector<2x128xf32>
    %106 = arith.divf %104, %105 : vector<2x128xf32>
    %107 = vector.extract_strided_slice %106 {offsets = [0, 0], sizes = [2, 32], strides = [1, 1]} : vector<2x128xf32> to vector<2x32xf32>
    %108 = vector.extract_strided_slice %106 {offsets = [0, 32], sizes = [2, 32], strides = [1, 1]} : vector<2x128xf32> to vector<2x32xf32>
    %109 = vector.extract_strided_slice %106 {offsets = [0, 96], sizes = [2, 32], strides = [1, 1]} : vector<2x128xf32> to vector<2x32xf32>
    %110 = vector.extract_strided_slice %101 {offsets = [0, 64], sizes = [2, 32], strides = [1, 1]} : vector<2x128xf32> to vector<2x32xf32>
    %111 = math.tanh %110 : vector<2x32xf32>
    %112 = arith.mulf %108, %96 : vector<2x32xf32>
    %113 = arith.mulf %107, %111 : vector<2x32xf32>
    %114 = arith.addf %112, %113 : vector<2x32xf32>
    %115 = math.tanh %114 : vector<2x32xf32>
    %116 = arith.mulf %109, %115 : vector<2x32xf32>
    %117 = vector.extract_strided_slice %5 {offsets = [12, 0], sizes = [2, 128], strides = [1, 1]} : vector<16x128xf32> to vector<2x128xf32>
    %cst_21 = arith.constant dense<0.000000e+00> : vector<2x128xf32>
    %118 = tpu.matmul %116, %6, %cst_21 {dimension_numbers = #tpu.dot_dimension_numbers<[1], [0], [0], [1], [0, 0, 1, 1], [], []>} : vector<2x32xf32>, vector<32x128xf32>, vector<2x128xf32> -> vector<2x128xf32>
    %119 = arith.addf %117, %118 : vector<2x128xf32>
    %120 = arith.negf %119 : vector<2x128xf32>
    %121 = math.exp %120 : vector<2x128xf32>
    %cst_22 = arith.constant 1.000000e+00 : f32
    %122 = vector.broadcast %cst_22 : f32 to vector<2x128xf32>
    %123 = arith.addf %122, %121 : vector<2x128xf32>
    %124 = arith.divf %122, %123 : vector<2x128xf32>
    %125 = vector.extract_strided_slice %124 {offsets = [0, 0], sizes = [2, 32], strides = [1, 1]} : vector<2x128xf32> to vector<2x32xf32>
    %126 = vector.extract_strided_slice %124 {offsets = [0, 32], sizes = [2, 32], strides = [1, 1]} : vector<2x128xf32> to vector<2x32xf32>
    %127 = vector.extract_strided_slice %124 {offsets = [0, 96], sizes = [2, 32], strides = [1, 1]} : vector<2x128xf32> to vector<2x32xf32>
    %128 = vector.extract_strided_slice %119 {offsets = [0, 64], sizes = [2, 32], strides = [1, 1]} : vector<2x128xf32> to vector<2x32xf32>
    %129 = math.tanh %128 : vector<2x32xf32>
    %130 = arith.mulf %126, %114 : vector<2x32xf32>
    %131 = arith.mulf %125, %129 : vector<2x32xf32>
    %132 = arith.addf %130, %131 : vector<2x32xf32>
    %133 = math.tanh %132 : vector<2x32xf32>
    %134 = arith.mulf %127, %133 : vector<2x32xf32>
    %135 = vector.extract_strided_slice %5 {offsets = [14, 0], sizes = [2, 128], strides = [1, 1]} : vector<16x128xf32> to vector<2x128xf32>
    %cst_23 = arith.constant dense<0.000000e+00> : vector<2x128xf32>
    %136 = tpu.matmul %134, %6, %cst_23 {dimension_numbers = #tpu.dot_dimension_numbers<[1], [0], [0], [1], [0, 0, 1, 1], [], []>} : vector<2x32xf32>, vector<32x128xf32>, vector<2x128xf32> -> vector<2x128xf32>
    %137 = arith.addf %135, %136 : vector<2x128xf32>
    %138 = arith.negf %137 : vector<2x128xf32>
    %139 = math.exp %138 : vector<2x128xf32>
    %cst_24 = arith.constant 1.000000e+00 : f32
    %140 = vector.broadcast %cst_24 : f32 to vector<2x128xf32>
    %141 = arith.addf %140, %139 : vector<2x128xf32>
    %142 = arith.divf %140, %141 : vector<2x128xf32>
    %143 = vector.extract_strided_slice %142 {offsets = [0, 0], sizes = [2, 32], strides = [1, 1]} : vector<2x128xf32> to vector<2x32xf32>
    %144 = vector.extract_strided_slice %142 {offsets = [0, 32], sizes = [2, 32], strides = [1, 1]} : vector<2x128xf32> to vector<2x32xf32>
    %145 = vector.extract_strided_slice %142 {offsets = [0, 96], sizes = [2, 32], strides = [1, 1]} : vector<2x128xf32> to vector<2x32xf32>
    %146 = vector.extract_strided_slice %137 {offsets = [0, 64], sizes = [2, 32], strides = [1, 1]} : vector<2x128xf32> to vector<2x32xf32>
    %147 = math.tanh %146 : vector<2x32xf32>
    %148 = arith.mulf %144, %132 : vector<2x32xf32>
    %149 = arith.mulf %143, %147 : vector<2x32xf32>
    %150 = arith.addf %148, %149 : vector<2x32xf32>
    %151 = math.tanh %150 : vector<2x32xf32>
    %152 = arith.mulf %145, %151 : vector<2x32xf32>
    %153 = tpu.concatenate %26, %44, %62, %80, %98, %116, %134, %152 in 1 : vector<2x32xf32>, vector<2x32xf32>, vector<2x32xf32>, vector<2x32xf32>, vector<2x32xf32>, vector<2x32xf32>, vector<2x32xf32>, vector<2x32xf32> -> vector<2x256xf32>
    %c0_25 = arith.constant 0 : index
    %c0_26 = arith.constant 0 : index
    %154 = vector.load %arg4[%c0_25, %c0_26] : memref<2x256xf32, #tpu.memory_space<vmem>>, vector<2x256xf32>
    tpu.vector_store %arg4[%c0_25, %c0_26], %153 {strides = array<i32>} : memref<2x256xf32, #tpu.memory_space<vmem>>, vector<2x256xf32>,
    %c0_27 = arith.constant 0 : index
    %c0_28 = arith.constant 0 : index
    %155 = vector.load %arg5[%c0_27, %c0_28] : memref<2x32xf32, #tpu.memory_space<vmem>>, vector<2x32xf32>
    tpu.vector_store %arg5[%c0_27, %c0_28], %152 {strides = array<i32>} : memref<2x32xf32, #tpu.memory_space<vmem>>, vector<2x32xf32>,
    %c0_29 = arith.constant 0 : index
    %c0_30 = arith.constant 0 : index
    %156 = vector.load %arg6[%c0_29, %c0_30] : memref<2x32xf32, #tpu.memory_space<vmem>>, vector<2x32xf32>
    tpu.vector_store %arg6[%c0_29, %c0_30], %150 {strides = array<i32>} : memref<2x32xf32, #tpu.memory_space<vmem>>, vector<2x32xf32>,
    return
  }
}

</mosaic_0001>

<llo_original>
// kernel: decoder_rnn_forward.1
$region0: #{decoder_rnn_forward.1}
  #allocation0 [shape = 'u32[]', space=smem, size = 0x4, offset = 0x4, fixed_abs, tag = 'smem constant byte address 0x4 - core index']
  #allocation1 [shape = 'u32[144,128]{1,0:T(1,128)}', space=vmem, size = 0x12000, scoped, tag = 'internal scratch']
  %s0 = inlined_call_operand.vmem [shape: f32[16,32], index: 0, kind: input, shape index: {}]
  %s1 = inlined_call_operand.vmem [shape: f32[32,128], index: 1, kind: input, shape index: {}]
  %s2 = inlined_call_operand.hbm [shape: f32[32,128], index: 2, kind: input, shape index: {}]
  %s3 = inlined_call_operand.vmem [shape: f32[1,128], index: 3, kind: input, shape index: {}]
  %s4 = inlined_call_operand.vmem [shape: f32[2,256], index: 4, kind: output, shape index: {0}]
  %s5 = inlined_call_operand.hbm [shape: f32[2,32], index: 5, kind: output, shape index: {1}]
  %s6 = inlined_call_operand.hbm [shape: f32[2,32], index: 6, kind: output, shape index: {2}]
  %7 = xla_tuple %s4, %s5, %s6
  %s8 = sld [smem:[#allocation0]]
  $region46: #{decoder_rnn_forward.1} parent=0
    _
  %s10 = ssub.s32 1, %s8
  %s11 = scalar_select 0, %s10, %s8
  $region1: #{decoder_rnn_forward.1} parent=0
    #allocation2 [shape = 'u8[16384]{0}', space=vmem, size = 0x4000, scoped, tag = 'input window, operand 2, single buffered']
    #allocation3 [shape = 's32[1]{0}', space=sflag, size = 0x4, scoped, tag = 'scoped memory for decoder_rnn_forward.1']
    #allocation4 [shape = 's32[1]{0}', space=sflag, size = 0x4, scoped, tag = 'scoped memory for decoder_rnn_forward.1']
    #allocation5 [shape = 'u8[1024]{0}', space=vmem, size = 0x400, scoped, tag = 'output window, operand 1, single buffered']
    #allocation6 [shape = 'u8[1024]{0}', space=vmem, size = 0x400, scoped, tag = 'output window, operand 2, single buffered']
    #allocation7 [shape = 's32[1]{0}', space=sflag, size = 0x4, scoped, tag = 'scoped memory for decoder_rnn_forward.1']
    %12 = vsyncpa [#allocation3], 0
    %13 = vsyncpa [#allocation4], 0
    %14 = vsyncpa [#allocation7], 0
    // Predicated region
    $region2: #{decoder_rnn_forward.1} parent=1 // pred_check
      _
    $region3: #{decoder_rnn_forward.1} parent=1 // pred_check_branch
      %16 = sbr.rel (0) target = $region5
    $region4: #{decoder_rnn_forward.1} parent=1 // pred_region
      _
    $region5: #{decoder_rnn_forward.1} parent=1 // pred_fallthru
      _
    // Predicated region
    $region6: #{decoder_rnn_forward.1} parent=1 // pred_check
      _
    $region7: #{decoder_rnn_forward.1} parent=1 // pred_check_branch
      %18 = sbr.rel (0) target = $region9
    $region8: #{decoder_rnn_forward.1} parent=1 // pred_region
      _
    $region9: #{decoder_rnn_forward.1} parent=1 // pred_fallthru
      _
    // Predicated region
    $region10: #{decoder_rnn_forward.1} parent=1 // pred_check
      _
    $region11: #{decoder_rnn_forward.1} parent=1 // pred_check_branch
      %20 = sbr.rel (0) target = $region13
    $region12: #{decoder_rnn_forward.1} parent=1 // pred_region
      %s22 = ssub.s32 512, 512
      %23 = vsyncadd [#allocation3], %s22
      %s24 = sshll.u32 [#allocation2], 4
      %s25 = int_to_ptr.vmem [resolvable:$true] %s24
      %30 = dma.hbm_to_vmem [thread:$0]  %s2, 512, %s25, [#allocation3], 128, 128, 8
    $region13: #{decoder_rnn_forward.1} parent=1 // pred_fallthru
      _
    // Predicated region
    $region14: #{decoder_rnn_forward.1} parent=1 // pred_check
      _
    $region15: #{decoder_rnn_forward.1} parent=1 // pred_check_branch
      %32 = sbr.rel (0) target = $region17
    $region16: #{decoder_rnn_forward.1} parent=1 // pred_region
      _
    $region17: #{decoder_rnn_forward.1} parent=1 // pred_fallthru
      _
    // Predicated region
    $region18: #{decoder_rnn_forward.1} parent=1 // pred_check
      _
    $region19: #{decoder_rnn_forward.1} parent=1 // pred_check_branch
      %34 = sbr.rel (0) target = $region21
    $region20: #{decoder_rnn_forward.1} parent=1 // pred_region
      %35 = dma.done [#allocation3], 512
    $region21: #{decoder_rnn_forward.1} parent=1 // pred_fallthru
      _
    %v36 = vld [vmem:[%s0] sm:$0xff]
    %v37 = vld [vmem:[%s0 + $0x8] sm:$0xff]
    %v38 = vld [vmem:[%s1] sm:$0xff]
    %v39 = vld [vmem:[%s1 + $0x8] sm:$0xff]
    %v40 = vld [vmem:[%s1 + $0x10] sm:$0xff]
    %v41 = vld [vmem:[%s1 + $0x18] sm:$0xff]
    %v42 = vld [vmem:[%s3] sm:$0x1]
    %v44 = vlaneseq
    %v45 = vshrl.u32 %v44, 7
    %v46 = vsub.s32 0, %v45
    %v47 = vrot.slane %v42, %v46
    %vm49 = vcmask 261120
    %v51 = vsel %vm49, %v36, 0
    %v54 = vsel %vm49, %v37, 0
    %56 = vmatprep.subr.mxu0 0.0
    %57 = vmatpush1.msra.mxu0 %v38
    %58 = vmatprep.subr.mxu0 0.0
    %59 = vmatpush1.msra.mxu0 %v39
    %60 = vmatprep.subr.mxu0 0.0
    %61 = vmatpush1.msra.mxu0 %v40
    %62 = vmatprep.subr.mxu0 0.0
    %63 = vmatpush1.msra.mxu0 %v41
    %64 = vmatprep.subr.mxu0 0.0
    %65 = vmatpush1.msra.mxu0 0.0
    %66 = vmatprep.subr.mxu0 0.0
    %67 = vmatpush1.msra.mxu0 0.0
    %68 = vmatprep.subr.mxu0 0.0
    %69 = vmatpush1.msra.mxu0 0.0
    %70 = vmatprep.subr.mxu0 0.0
    %71 = vmatpush1.msra.mxu0 0.0
    %72 = vmatprep.subr.mxu0 0.0
    %73 = vmatpush1.msra.mxu0 0.0
    %74 = vmatprep.subr.mxu0 0.0
    %75 = vmatpush1.msra.mxu0 0.0
    %76 = vmatprep.subr.mxu0 0.0
    %77 = vmatpush1.msra.mxu0 0.0
    %78 = vmatprep.subr.mxu0 0.0
    %79 = vmatpush1.msra.mxu0 0.0
    %80 = vmatprep.subr.mxu0 0.0
    %81 = vmatpush1.msra.mxu0 0.0
    %82 = vmatprep.subr.mxu0 0.0
    %83 = vmatpush1.msra.mxu0 0.0
    %84 = vmatprep.subr.mxu0 0.0
    %85 = vmatpush1.msra.mxu0 0.0
    %86 = vmatprep.subr.mxu0 0.0
    %87 = vmatpush1.msra.mxu0 0.0
    %88 = vmatprep.subr.mxu0 0.0
    %89 = vmatpush1.msra.mxu0 0.0
    %90 = vmatprep.subr.mxu0 0.0
    %91 = vmatpush1.msra.mxu0 0.0
    %92 = vmatprep.subr.mxu0 0.0
    %93 = vmatpush1.msra.mxu0 0.0
    %94 = vmatprep.subr.mxu0 0.0
    %95 = vmatpush1.msra.mxu0 0.0
    %96 = vmatprep.subr.mxu0 0.0
    %97 = vmatpush1.msra.mxu0 0.0
    %98 = vmatprep.subr.mxu0 0.0
    %99 = vmatpush1.msra.mxu0 0.0
    %100 = vmatprep.subr.mxu0 0.0
    %101 = vmatpush1.msra.mxu0 0.0
    %102 = vmatprep.subr.mxu0 0.0
    %103 = vmatpush1.msra.mxu0 0.0
    %104 = vmatprep.subr.mxu0 0.0
    %105 = vmatpush1.msra.mxu0 0.0
    %106 = vmatprep.subr.mxu0 0.0
    %107 = vmatpush1.msra.mxu0 0.0
    %108 = vmatprep.subr.mxu0 0.0
    %109 = vmatpush1.msra.mxu0 0.0
    %110 = vmatprep.subr.mxu0 0.0
    %111 = vmatpush1.msra.mxu0 0.0
    %112 = vmatprep.subr.mxu0 0.0
    %113 = vmatpush1.msra.mxu0 0.0
    %114 = vmatprep.subr.mxu0 0.0
    %115 = vmatpush1.msra.mxu0 0.0
    %116 = vmatprep.subr.mxu0 0.0
    %117 = vmatpush1.msra.mxu0 0.0
    %118 = vmatprep.subr.mxu0 0.0
    %119 = vmatpush1.msra.mxu0 0.0
    %120 = vmatprep.mubr.f32.mxu0 0.0
    %121 = vmatmul.mubr.f32.gmra.mrb[0].mxu0 %v51
    %v122 = vpop.f32.mrb[0].mxu0
    %v123 = vadd.f32 %v47, %v122
    %v124 = vpop.f32.mrb[0].mxu0
    %125 = vmatprep.mubr.f32.mxu0 0.0
    %126 = vmatmul.mubr.f32.gmra.mrb[0].mxu0 %v54
    %v127 = vpop.f32.mrb[0].mxu0
    %v128 = vadd.f32 %v47, %v127
    %v129 = vpop.f32.mrb[0].mxu0
    %130 = vdwg.mxu0
    %v131 = vld [vmem:[#allocation2] sm:$0xff]
    %v132 = vld [vmem:[#allocation2 + $0x8] sm:$0xff]
    %v133 = vld [vmem:[#allocation2 + $0x10] sm:$0xff]
    %v134 = vld [vmem:[#allocation2 + $0x18] sm:$0xff]
    %v136 = vsel %vm49, 0.0, 0
    %138 = vmatprep.subr.mxu0 0.0
    %139 = vmatpush1.msra.mxu0 %v131
    %140 = vmatprep.subr.mxu0 0.0
    %141 = vmatpush1.msra.mxu0 %v132
    %142 = vmatprep.subr.mxu0 0.0
    %143 = vmatpush1.msra.mxu0 %v133
    %144 = vmatprep.subr.mxu0 0.0
    %145 = vmatpush1.msra.mxu0 %v134
    %146 = vmatprep.subr.mxu0 0.0
    %147 = vmatpush1.msra.mxu0 0.0
    %148 = vmatprep.subr.mxu0 0.0
    %149 = vmatpush1.msra.mxu0 0.0
    %150 = vmatprep.subr.mxu0 0.0
    %151 = vmatpush1.msra.mxu0 0.0
    %152 = vmatprep.subr.mxu0 0.0
    %153 = vmatpush1.msra.mxu0 0.0
    %154 = vmatprep.subr.mxu0 0.0
    %155 = vmatpush1.msra.mxu0 0.0
    %156 = vmatprep.subr.mxu0 0.0
    %157 = vmatpush1.msra.mxu0 0.0
    %158 = vmatprep.subr.mxu0 0.0
    %159 = vmatpush1.msra.mxu0 0.0
    %160 = vmatprep.subr.mxu0 0.0
    %161 = vmatpush1.msra.mxu0 0.0
    %162 = vmatprep.subr.mxu0 0.0
    %163 = vmatpush1.msra.mxu0 0.0
    %164 = vmatprep.subr.mxu0 0.0
    %165 = vmatpush1.msra.mxu0 0.0
    %166 = vmatprep.subr.mxu0 0.0
    %167 = vmatpush1.msra.mxu0 0.0
    %168 = vmatprep.subr.mxu0 0.0
    %169 = vmatpush1.msra.mxu0 0.0
    %170 = vmatprep.subr.mxu0 0.0
    %171 = vmatpush1.msra.mxu0 0.0
    %172 = vmatprep.subr.mxu0 0.0
    %173 = vmatpush1.msra.mxu0 0.0
    %174 = vmatprep.subr.mxu0 0.0
    %175 = vmatpush1.msra.mxu0 0.0
    %176 = vmatprep.subr.mxu0 0.0
    %177 = vmatpush1.msra.mxu0 0.0
    %178 = vmatprep.subr.mxu0 0.0
    %179 = vmatpush1.msra.mxu0 0.0
    %180 = vmatprep.subr.mxu0 0.0
    %181 = vmatpush1.msra.mxu0 0.0
    %182 = vmatprep.subr.mxu0 0.0
    %183 = vmatpush1.msra.mxu0 0.0
    %184 = vmatprep.subr.mxu0 0.0
    %185 = vmatpush1.msra.mxu0 0.0
    %186 = vmatprep.subr.mxu0 0.0
    %187 = vmatpush1.msra.mxu0 0.0
    %188 = vmatprep.subr.mxu0 0.0
    %189 = vmatpush1.msra.mxu0 0.0
    %190 = vmatprep.subr.mxu0 0.0
    %191 = vmatpush1.msra.mxu0 0.0
    %192 = vmatprep.subr.mxu0 0.0
    %193 = vmatpush1.msra.mxu0 0.0
    %194 = vmatprep.subr.mxu0 0.0
    %195 = vmatpush1.msra.mxu0 0.0
    %196 = vmatprep.subr.mxu0 0.0
    %197 = vmatpush1.msra.mxu0 0.0
    %198 = vmatprep.subr.mxu0 0.0
    %199 = vmatpush1.msra.mxu0 0.0
    %200 = vmatprep.subr.mxu0 0.0
    %201 = vmatpush1.msra.mxu0 0.0
    %202 = vmatprep.mubr.f32.mxu0 0.0
    %203 = vmatmul.mubr.f32.gmra.mrb[0].mxu0 %v136
    %v204 = vpop.f32.mrb[0].mxu0
    %v205 = vadd.f32 0.0, %v204
    %v206 = vpop.f32.mrb[0].mxu0
    %207 = vdwg.mxu0
    %v208 = vadd.f32 %v123, %v205
    %v209 = vxor.u32 %v208, 2147483648
    %v210 = vmul.f32 %v209, 1.442695
    %v211 = vpow.pop %v210
    %v212 = vadd.f32 %v211, 1.0
    %v213 = vrcp.pop %v212
    %v214 = vmul.f32 1.0, %v213
    %v215 = vtanh.pop %v208
    %v216 = vmul.f32 %v214, 0.0
    %218 = vrot.lane.b32.xlu0 %v215, 64
    %v219 = vpop.permute.xlu0 %218
    %v221 = vmul.f32 %v214, %v219
    %223 = vrot.lane.b32.xlu0 %v221, 32
    %v224 = vpop.permute.xlu0 %223
    %v226 = vadd.f32 %v216, %v224
    %v227 = vtanh.pop %v226
    %229 = vrot.lane.b32.xlu0 %v227, 64
    %v230 = vpop.permute.xlu0 %229
    %v232 = vmul.f32 %v214, %v230
    %234 = vrot.lane.b32.xlu0 %v232, 32
    %v235 = vpop.permute.xlu0 %234
    %v236 = vsel %vm49, %v235, 0
    %238 = vmatprep.subr.mxu0 0.0
    %239 = vmatpush1.msra.mxu0 %v131
    %240 = vmatprep.subr.mxu0 0.0
    %241 = vmatpush1.msra.mxu0 %v132
    %242 = vmatprep.subr.mxu0 0.0
    %243 = vmatpush1.msra.mxu0 %v133
    %244 = vmatprep.subr.mxu0 0.0
    %245 = vmatpush1.msra.mxu0 %v134
    %246 = vmatprep.subr.mxu0 0.0
    %247 = vmatpush1.msra.mxu0 0.0
    %248 = vmatprep.subr.mxu0 0.0
    %249 = vmatpush1.msra.mxu0 0.0
    %250 = vmatprep.subr.mxu0 0.0
    %251 = vmatpush1.msra.mxu0 0.0
    %252 = vmatprep.subr.mxu0 0.0
    %253 = vmatpush1.msra.mxu0 0.0
    %254 = vmatprep.subr.mxu0 0.0
    %255 = vmatpush1.msra.mxu0 0.0
    %256 = vmatprep.subr.mxu0 0.0
    %257 = vmatpush1.msra.mxu0 0.0
    %258 = vmatprep.subr.mxu0 0.0
    %259 = vmatpush1.msra.mxu0 0.0
    %260 = vmatprep.subr.mxu0 0.0
    %261 = vmatpush1.msra.mxu0 0.0
    %262 = vmatprep.subr.mxu0 0.0
    %263 = vmatpush1.msra.mxu0 0.0
    %264 = vmatprep.subr.mxu0 0.0
    %265 = vmatpush1.msra.mxu0 0.0
    %266 = vmatprep.subr.mxu0 0.0
    %267 = vmatpush1.msra.mxu0 0.0
    %268 = vmatprep.subr.mxu0 0.0
    %269 = vmatpush1.msra.mxu0 0.0
    %270 = vmatprep.subr.mxu0 0.0
    %271 = vmatpush1.msra.mxu0 0.0
    %272 = vmatprep.subr.mxu0 0.0
    %273 = vmatpush1.msra.mxu0 0.0
    %274 = vmatprep.subr.mxu0 0.0
    %275 = vmatpush1.msra.mxu0 0.0
    %276 = vmatprep.subr.mxu0 0.0
    %277 = vmatpush1.msra.mxu0 0.0
    %278 = vmatprep.subr.mxu0 0.0
    %279 = vmatpush1.msra.mxu0 0.0
    %280 = vmatprep.subr.mxu0 0.0
    %281 = vmatpush1.msra.mxu0 0.0
    %282 = vmatprep.subr.mxu0 0.0
    %283 = vmatpush1.msra.mxu0 0.0
    %284 = vmatprep.subr.mxu0 0.0
    %285 = vmatpush1.msra.mxu0 0.0
    %286 = vmatprep.subr.mxu0 0.0
    %287 = vmatpush1.msra.mxu0 0.0
    %288 = vmatprep.subr.mxu0 0.0
    %289 = vmatpush1.msra.mxu0 0.0
    %290 = vmatprep.subr.mxu0 0.0
    %291 = vmatpush1.msra.mxu0 0.0
    %292 = vmatprep.subr.mxu0 0.0
    %293 = vmatpush1.msra.mxu0 0.0
    %294 = vmatprep.subr.mxu0 0.0
    %295 = vmatpush1.msra.mxu0 0.0
    %296 = vmatprep.subr.mxu0 0.0
    %297 = vmatpush1.msra.mxu0 0.0
    %298 = vmatprep.subr.mxu0 0.0
    %299 = vmatpush1.msra.mxu0 0.0
    %300 = vmatprep.subr.mxu0 0.0
    %301 = vmatpush1.msra.mxu0 0.0
    %302 = vmatprep.mubr.f32.mxu0 0.0
    %303 = vmatmul.mubr.f32.gmra.mrb[0].mxu0 %v236
    %v304 = vpop.f32.mrb[0].mxu0
    %v305 = vadd.f32 0.0, %v304
    %v306 = vpop.f32.mrb[0].mxu0
    %307 = vdwg.mxu0
    %v309 = vrot.slane %v305, 6
    %v311 = vadd.f32 %v123, %v309
    %v312 = vxor.u32 %v311, 2147483648
    %v313 = vmul.f32 %v312, 1.442695
    %v314 = vpow.pop %v313
    %v315 = vadd.f32 %v314, 1.0
    %v316 = vrcp.pop %v315
    %v317 = vmul.f32 1.0, %v316
    %v318 = vtanh.pop %v311
    %v320 = vrot.slane %v226, 6
    %v322 = vmul.f32 %v317, %v320
    %324 = vrot.lane.b32.xlu0 %v318, 64
    %v325 = vpop.permute.xlu0 %324
    %v327 = vmul.f32 %v317, %v325
    %329 = vrot.lane.b32.xlu0 %v327, 32
    %v330 = vpop.permute.xlu0 %329
    %v332 = vadd.f32 %v322, %v330
    %v333 = vtanh.pop %v332
    %335 = vrot.lane.b32.xlu0 %v333, 64
    %v336 = vpop.permute.xlu0 %335
    %v338 = vmul.f32 %v317, %v336
    %v340 = vrot.slane %v338, 2
    %341 = vrot.lane.b32.xlu0 %v340, 32
    %v342 = vpop.permute.xlu0 %341
    %v343 = vsel %vm49, %v342, 0
    %345 = vmatprep.subr.mxu0 0.0
    %346 = vmatpush1.msra.mxu0 %v131
    %347 = vmatprep.subr.mxu0 0.0
    %348 = vmatpush1.msra.mxu0 %v132
    %349 = vmatprep.subr.mxu0 0.0
    %350 = vmatpush1.msra.mxu0 %v133
    %351 = vmatprep.subr.mxu0 0.0
    %352 = vmatpush1.msra.mxu0 %v134
    %353 = vmatprep.subr.mxu0 0.0
    %354 = vmatpush1.msra.mxu0 0.0
    %355 = vmatprep.subr.mxu0 0.0
    %356 = vmatpush1.msra.mxu0 0.0
    %357 = vmatprep.subr.mxu0 0.0
    %358 = vmatpush1.msra.mxu0 0.0
    %359 = vmatprep.subr.mxu0 0.0
    %360 = vmatpush1.msra.mxu0 0.0
    %361 = vmatprep.subr.mxu0 0.0
    %362 = vmatpush1.msra.mxu0 0.0
    %363 = vmatprep.subr.mxu0 0.0
    %364 = vmatpush1.msra.mxu0 0.0
    %365 = vmatprep.subr.mxu0 0.0
    %366 = vmatpush1.msra.mxu0 0.0
    %367 = vmatprep.subr.mxu0 0.0
    %368 = vmatpush1.msra.mxu0 0.0
    %369 = vmatprep.subr.mxu0 0.0
    %370 = vmatpush1.msra.mxu0 0.0
    %371 = vmatprep.subr.mxu0 0.0
    %372 = vmatpush1.msra.mxu0 0.0
    %373 = vmatprep.subr.mxu0 0.0
    %374 = vmatpush1.msra.mxu0 0.0
    %375 = vmatprep.subr.mxu0 0.0
    %376 = vmatpush1.msra.mxu0 0.0
    %377 = vmatprep.subr.mxu0 0.0
    %378 = vmatpush1.msra.mxu0 0.0
    %379 = vmatprep.subr.mxu0 0.0
    %380 = vmatpush1.msra.mxu0 0.0
    %381 = vmatprep.subr.mxu0 0.0
    %382 = vmatpush1.msra.mxu0 0.0
    %383 = vmatprep.subr.mxu0 0.0
    %384 = vmatpush1.msra.mxu0 0.0
    %385 = vmatprep.subr.mxu0 0.0
    %386 = vmatpush1.msra.mxu0 0.0
    %387 = vmatprep.subr.mxu0 0.0
    %388 = vmatpush1.msra.mxu0 0.0
    %389 = vmatprep.subr.mxu0 0.0
    %390 = vmatpush1.msra.mxu0 0.0
    %391 = vmatprep.subr.mxu0 0.0
    %392 = vmatpush1.msra.mxu0 0.0
    %393 = vmatprep.subr.mxu0 0.0
    %394 = vmatpush1.msra.mxu0 0.0
    %395 = vmatprep.subr.mxu0 0.0
    %396 = vmatpush1.msra.mxu0 0.0
    %397 = vmatprep.subr.mxu0 0.0
    %398 = vmatpush1.msra.mxu0 0.0
    %399 = vmatprep.subr.mxu0 0.0
    %400 = vmatpush1.msra.mxu0 0.0
    %401 = vmatprep.subr.mxu0 0.0
    %402 = vmatpush1.msra.mxu0 0.0
    %403 = vmatprep.subr.mxu0 0.0
    %404 = vmatpush1.msra.mxu0 0.0
    %405 = vmatprep.subr.mxu0 0.0
    %406 = vmatpush1.msra.mxu0 0.0
    %407 = vmatprep.subr.mxu0 0.0
    %408 = vmatpush1.msra.mxu0 0.0
    %409 = vmatprep.mubr.f32.mxu0 0.0
    %410 = vmatmul.mubr.f32.gmra.mrb[0].mxu0 %v343
    %v411 = vpop.f32.mrb[0].mxu0
    %v412 = vadd.f32 0.0, %v411
    %v413 = vpop.f32.mrb[0].mxu0
    %414 = vdwg.mxu0
    %v416 = vrot.slane %v412, 4
    %v418 = vadd.f32 %v123, %v416
    %v419 = vxor.u32 %v418, 2147483648
    %v420 = vmul.f32 %v419, 1.442695
    %v421 = vpow.pop %v420
    %v422 = vadd.f32 %v421, 1.0
    %v423 = vrcp.pop %v422
    %v424 = vmul.f32 1.0, %v423
    %v425 = vtanh.pop %v418
    %v427 = vrot.slane %v332, 6
    %v429 = vmul.f32 %v424, %v427
    %431 = vrot.lane.b32.xlu0 %v425, 64
    %v432 = vpop.permute.xlu0 %431
    %v434 = vmul.f32 %v424, %v432
    %436 = vrot.lane.b32.xlu0 %v434, 32
    %v437 = vpop.permute.xlu0 %436
    %v439 = vadd.f32 %v429, %v437
    %v440 = vtanh.pop %v439
    %442 = vrot.lane.b32.xlu0 %v440, 64
    %v443 = vpop.permute.xlu0 %442
    %v445 = vmul.f32 %v424, %v443
    %v447 = vrot.slane %v445, 4
    %448 = vrot.lane.b32.xlu0 %v447, 32
    %v449 = vpop.permute.xlu0 %448
    %v450 = vsel %vm49, %v449, 0
    %452 = vmatprep.subr.mxu0 0.0
    %453 = vmatpush1.msra.mxu0 %v131
    %454 = vmatprep.subr.mxu0 0.0
    %455 = vmatpush1.msra.mxu0 %v132
    %456 = vmatprep.subr.mxu0 0.0
    %457 = vmatpush1.msra.mxu0 %v133
    %458 = vmatprep.subr.mxu0 0.0
    %459 = vmatpush1.msra.mxu0 %v134
    %460 = vmatprep.subr.mxu0 0.0
    %461 = vmatpush1.msra.mxu0 0.0
    %462 = vmatprep.subr.mxu0 0.0
    %463 = vmatpush1.msra.mxu0 0.0
    %464 = vmatprep.subr.mxu0 0.0
    %465 = vmatpush1.msra.mxu0 0.0
    %466 = vmatprep.subr.mxu0 0.0
    %467 = vmatpush1.msra.mxu0 0.0
    %468 = vmatprep.subr.mxu0 0.0
    %469 = vmatpush1.msra.mxu0 0.0
    %470 = vmatprep.subr.mxu0 0.0
    %471 = vmatpush1.msra.mxu0 0.0
    %472 = vmatprep.subr.mxu0 0.0
    %473 = vmatpush1.msra.mxu0 0.0
    %474 = vmatprep.subr.mxu0 0.0
    %475 = vmatpush1.msra.mxu0 0.0
    %476 = vmatprep.subr.mxu0 0.0
    %477 = vmatpush1.msra.mxu0 0.0
    %478 = vmatprep.subr.mxu0 0.0
    %479 = vmatpush1.msra.mxu0 0.0
    %480 = vmatprep.subr.mxu0 0.0
    %481 = vmatpush1.msra.mxu0 0.0
    %482 = vmatprep.subr.mxu0 0.0
    %483 = vmatpush1.msra.mxu0 0.0
    %484 = vmatprep.subr.mxu0 0.0
    %485 = vmatpush1.msra.mxu0 0.0
    %486 = vmatprep.subr.mxu0 0.0
    %487 = vmatpush1.msra.mxu0 0.0
    %488 = vmatprep.subr.mxu0 0.0
    %489 = vmatpush1.msra.mxu0 0.0
    %490 = vmatprep.subr.mxu0 0.0
    %491 = vmatpush1.msra.mxu0 0.0
    %492 = vmatprep.subr.mxu0 0.0
    %493 = vmatpush1.msra.mxu0 0.0
    %494 = vmatprep.subr.mxu0 0.0
    %495 = vmatpush1.msra.mxu0 0.0
    %496 = vmatprep.subr.mxu0 0.0
    %497 = vmatpush1.msra.mxu0 0.0
    %498 = vmatprep.subr.mxu0 0.0
    %499 = vmatpush1.msra.mxu0 0.0
    %500 = vmatprep.subr.mxu0 0.0
    %501 = vmatpush1.msra.mxu0 0.0
    %502 = vmatprep.subr.mxu0 0.0
    %503 = vmatpush1.msra.mxu0 0.0
    %504 = vmatprep.subr.mxu0 0.0
    %505 = vmatpush1.msra.mxu0 0.0
    %506 = vmatprep.subr.mxu0 0.0
    %507 = vmatpush1.msra.mxu0 0.0
    %508 = vmatprep.subr.mxu0 0.0
    %509 = vmatpush1.msra.mxu0 0.0
    %510 = vmatprep.subr.mxu0 0.0
    %511 = vmatpush1.msra.mxu0 0.0
    %512 = vmatprep.subr.mxu0 0.0
    %513 = vmatpush1.msra.mxu0 0.0
    %514 = vmatprep.subr.mxu0 0.0
    %515 = vmatpush1.msra.mxu0 0.0
    %516 = vmatprep.mubr.f32.mxu0 0.0
    %517 = vmatmul.mubr.f32.gmra.mrb[0].mxu0 %v450
    %v518 = vpop.f32.mrb[0].mxu0
    %v519 = vadd.f32 0.0, %v518
    %v520 = vpop.f32.mrb[0].mxu0
    %521 = vdwg.mxu0
    %v523 = vrot.slane %v519, 2
    %v525 = vadd.f32 %v123, %v523
    %v526 = vxor.u32 %v525, 2147483648
    %v527 = vmul.f32 %v526, 1.442695
    %v528 = vpow.pop %v527
    %v529 = vadd.f32 %v528, 1.0
    %v530 = vrcp.pop %v529
    %v531 = vmul.f32 1.0, %v530
    %v532 = vtanh.pop %v525
    %v534 = vrot.slane %v439, 6
    %v536 = vmul.f32 %v531, %v534
    %538 = vrot.lane.b32.xlu0 %v532, 64
    %v539 = vpop.permute.xlu0 %538
    %v541 = vmul.f32 %v531, %v539
    %543 = vrot.lane.b32.xlu0 %v541, 32
    %v544 = vpop.permute.xlu0 %543
    %v546 = vadd.f32 %v536, %v544
    %v547 = vtanh.pop %v546
    %549 = vrot.lane.b32.xlu0 %v547, 64
    %v550 = vpop.permute.xlu0 %549
    %v552 = vmul.f32 %v531, %v550
    %v554 = vrot.slane %v552, 6
    %555 = vrot.lane.b32.xlu0 %v554, 32
    %v556 = vpop.permute.xlu0 %555
    %v557 = vsel %vm49, %v556, 0
    %559 = vmatprep.subr.mxu0 0.0
    %560 = vmatpush1.msra.mxu0 %v131
    %561 = vmatprep.subr.mxu0 0.0
    %562 = vmatpush1.msra.mxu0 %v132
    %563 = vmatprep.subr.mxu0 0.0
    %564 = vmatpush1.msra.mxu0 %v133
    %565 = vmatprep.subr.mxu0 0.0
    %566 = vmatpush1.msra.mxu0 %v134
    %567 = vmatprep.subr.mxu0 0.0
    %568 = vmatpush1.msra.mxu0 0.0
    %569 = vmatprep.subr.mxu0 0.0
    %570 = vmatpush1.msra.mxu0 0.0
    %571 = vmatprep.subr.mxu0 0.0
    %572 = vmatpush1.msra.mxu0 0.0
    %573 = vmatprep.subr.mxu0 0.0
    %574 = vmatpush1.msra.mxu0 0.0
    %575 = vmatprep.subr.mxu0 0.0
    %576 = vmatpush1.msra.mxu0 0.0
    %577 = vmatprep.subr.mxu0 0.0
    %578 = vmatpush1.msra.mxu0 0.0
    %579 = vmatprep.subr.mxu0 0.0
    %580 = vmatpush1.msra.mxu0 0.0
    %581 = vmatprep.subr.mxu0 0.0
    %582 = vmatpush1.msra.mxu0 0.0
    %583 = vmatprep.subr.mxu0 0.0
    %584 = vmatpush1.msra.mxu0 0.0
    %585 = vmatprep.subr.mxu0 0.0
    %586 = vmatpush1.msra.mxu0 0.0
    %587 = vmatprep.subr.mxu0 0.0
    %588 = vmatpush1.msra.mxu0 0.0
    %589 = vmatprep.subr.mxu0 0.0
    %590 = vmatpush1.msra.mxu0 0.0
    %591 = vmatprep.subr.mxu0 0.0
    %592 = vmatpush1.msra.mxu0 0.0
    %593 = vmatprep.subr.mxu0 0.0
    %594 = vmatpush1.msra.mxu0 0.0
    %595 = vmatprep.subr.mxu0 0.0
    %596 = vmatpush1.msra.mxu0 0.0
    %597 = vmatprep.subr.mxu0 0.0
    %598 = vmatpush1.msra.mxu0 0.0
    %599 = vmatprep.subr.mxu0 0.0
    %600 = vmatpush1.msra.mxu0 0.0
    %601 = vmatprep.subr.mxu0 0.0
    %602 = vmatpush1.msra.mxu0 0.0
    %603 = vmatprep.subr.mxu0 0.0
    %604 = vmatpush1.msra.mxu0 0.0
    %605 = vmatprep.subr.mxu0 0.0
    %606 = vmatpush1.msra.mxu0 0.0
    %607 = vmatprep.subr.mxu0 0.0
    %608 = vmatpush1.msra.mxu0 0.0
    %609 = vmatprep.subr.mxu0 0.0
    %610 = vmatpush1.msra.mxu0 0.0
    %611 = vmatprep.subr.mxu0 0.0
    %612 = vmatpush1.msra.mxu0 0.0
    %613 = vmatprep.subr.mxu0 0.0
    %614 = vmatpush1.msra.mxu0 0.0
    %615 = vmatprep.subr.mxu0 0.0
    %616 = vmatpush1.msra.mxu0 0.0
    %617 = vmatprep.subr.mxu0 0.0
    %618 = vmatpush1.msra.mxu0 0.0
    %619 = vmatprep.subr.mxu0 0.0
    %620 = vmatpush1.msra.mxu0 0.0
    %621 = vmatprep.subr.mxu0 0.0
    %622 = vmatpush1.msra.mxu0 0.0
    %623 = vmatprep.mubr.f32.mxu0 0.0
    %624 = vmatmul.mubr.f32.gmra.mrb[0].mxu0 %v557
    %v625 = vpop.f32.mrb[0].mxu0
    %v626 = vadd.f32 0.0, %v625
    %v627 = vpop.f32.mrb[0].mxu0
    %628 = vdwg.mxu0
    %v629 = vadd.f32 %v128, %v626
    %v630 = vxor.u32 %v629, 2147483648
    %v631 = vmul.f32 %v630, 1.442695
    %v632 = vpow.pop %v631
    %v633 = vadd.f32 %v632, 1.0
    %v634 = vrcp.pop %v633
    %v635 = vmul.f32 1.0, %v634
    %v636 = vtanh.pop %v629
    %v638 = vrot.slane %v546, 6
    %v640 = vmul.f32 %v635, %v638
    %642 = vrot.lane.b32.xlu0 %v636, 64
    %v643 = vpop.permute.xlu0 %642
    %v645 = vmul.f32 %v635, %v643
    %647 = vrot.lane.b32.xlu0 %v645, 32
    %v648 = vpop.permute.xlu0 %647
    %v650 = vadd.f32 %v640, %v648
    %v651 = vtanh.pop %v650
    %653 = vrot.lane.b32.xlu0 %v651, 64
    %v654 = vpop.permute.xlu0 %653
    %v656 = vmul.f32 %v635, %v654
    %658 = vrot.lane.b32.xlu0 %v656, 32
    %v659 = vpop.permute.xlu0 %658
    %v660 = vsel %vm49, %v659, 0
    %662 = vmatprep.subr.mxu0 0.0
    %663 = vmatpush1.msra.mxu0 %v131
    %664 = vmatprep.subr.mxu0 0.0
    %665 = vmatpush1.msra.mxu0 %v132
    %666 = vmatprep.subr.mxu0 0.0
    %667 = vmatpush1.msra.mxu0 %v133
    %668 = vmatprep.subr.mxu0 0.0
    %669 = vmatpush1.msra.mxu0 %v134
    %670 = vmatprep.subr.mxu0 0.0
    %671 = vmatpush1.msra.mxu0 0.0
    %672 = vmatprep.subr.mxu0 0.0
    %673 = vmatpush1.msra.mxu0 0.0
    %674 = vmatprep.subr.mxu0 0.0
    %675 = vmatpush1.msra.mxu0 0.0
    %676 = vmatprep.subr.mxu0 0.0
    %677 = vmatpush1.msra.mxu0 0.0
    %678 = vmatprep.subr.mxu0 0.0
    %679 = vmatpush1.msra.mxu0 0.0
    %680 = vmatprep.subr.mxu0 0.0
    %681 = vmatpush1.msra.mxu0 0.0
    %682 = vmatprep.subr.mxu0 0.0
    %683 = vmatpush1.msra.mxu0 0.0
    %684 = vmatprep.subr.mxu0 0.0
    %685 = vmatpush1.msra.mxu0 0.0
    %686 = vmatprep.subr.mxu0 0.0
    %687 = vmatpush1.msra.mxu0 0.0
    %688 = vmatprep.subr.mxu0 0.0
    %689 = vmatpush1.msra.mxu0 0.0
    %690 = vmatprep.subr.mxu0 0.0
    %691 = vmatpush1.msra.mxu0 0.0
    %692 = vmatprep.subr.mxu0 0.0
    %693 = vmatpush1.msra.mxu0 0.0
    %694 = vmatprep.subr.mxu0 0.0
    %695 = vmatpush1.msra.mxu0 0.0
    %696 = vmatprep.subr.mxu0 0.0
    %697 = vmatpush1.msra.mxu0 0.0
    %698 = vmatprep.subr.mxu0 0.0
    %699 = vmatpush1.msra.mxu0 0.0
    %700 = vmatprep.subr.mxu0 0.0
    %701 = vmatpush1.msra.mxu0 0.0
    %702 = vmatprep.subr.mxu0 0.0
    %703 = vmatpush1.msra.mxu0 0.0
    %704 = vmatprep.subr.mxu0 0.0
    %705 = vmatpush1.msra.mxu0 0.0
    %706 = vmatprep.subr.mxu0 0.0
    %707 = vmatpush1.msra.mxu0 0.0
    %708 = vmatprep.subr.mxu0 0.0
    %709 = vmatpush1.msra.mxu0 0.0
    %710 = vmatprep.subr.mxu0 0.0
    %711 = vmatpush1.msra.mxu0 0.0
    %712 = vmatprep.subr.mxu0 0.0
    %713 = vmatpush1.msra.mxu0 0.0
    %714 = vmatprep.subr.mxu0 0.0
    %715 = vmatpush1.msra.mxu0 0.0
    %716 = vmatprep.subr.mxu0 0.0
    %717 = vmatpush1.msra.mxu0 0.0
    %718 = vmatprep.subr.mxu0 0.0
    %719 = vmatpush1.msra.mxu0 0.0
    %720 = vmatprep.subr.mxu0 0.0
    %721 = vmatpush1.msra.mxu0 0.0
    %722 = vmatprep.subr.mxu0 0.0
    %723 = vmatpush1.msra.mxu0 0.0
    %724 = vmatprep.subr.mxu0 0.0
    %725 = vmatpush1.msra.mxu0 0.0
    %726 = vmatprep.mubr.f32.mxu0 0.0
    %727 = vmatmul.mubr.f32.gmra.mrb[0].mxu0 %v660
    %v728 = vpop.f32.mrb[0].mxu0
    %v729 = vadd.f32 0.0, %v728
    %v730 = vpop.f32.mrb[0].mxu0
    %731 = vdwg.mxu0
    %v733 = vrot.slane %v729, 6
    %v735 = vadd.f32 %v128, %v733
    %v736 = vxor.u32 %v735, 2147483648
    %v737 = vmul.f32 %v736, 1.442695
    %v738 = vpow.pop %v737
    %v739 = vadd.f32 %v738, 1.0
    %v740 = vrcp.pop %v739
    %v741 = vmul.f32 1.0, %v740
    %v742 = vtanh.pop %v735
    %v744 = vrot.slane %v650, 6
    %v746 = vmul.f32 %v741, %v744
    %748 = vrot.lane.b32.xlu0 %v742, 64
    %v749 = vpop.permute.xlu0 %748
    %v751 = vmul.f32 %v741, %v749
    %753 = vrot.lane.b32.xlu0 %v751, 32
    %v754 = vpop.permute.xlu0 %753
    %v756 = vadd.f32 %v746, %v754
    %v757 = vtanh.pop %v756
    %759 = vrot.lane.b32.xlu0 %v757, 64
    %v760 = vpop.permute.xlu0 %759
    %v762 = vmul.f32 %v741, %v760
    %v764 = vrot.slane %v762, 2
    %765 = vrot.lane.b32.xlu0 %v764, 32
    %v766 = vpop.permute.xlu0 %765
    %v767 = vsel %vm49, %v766, 0
    %769 = vmatprep.subr.mxu0 0.0
    %770 = vmatpush1.msra.mxu0 %v131
    %771 = vmatprep.subr.mxu0 0.0
    %772 = vmatpush1.msra.mxu0 %v132
    %773 = vmatprep.subr.mxu0 0.0
    %774 = vmatpush1.msra.mxu0 %v133
    %775 = vmatprep.subr.mxu0 0.0
    %776 = vmatpush1.msra.mxu0 %v134
    %777 = vmatprep.subr.mxu0 0.0
    %778 = vmatpush1.msra.mxu0 0.0
    %779 = vmatprep.subr.mxu0 0.0
    %780 = vmatpush1.msra.mxu0 0.0
    %781 = vmatprep.subr.mxu0 0.0
    %782 = vmatpush1.msra.mxu0 0.0
    %783 = vmatprep.subr.mxu0 0.0
    %784 = vmatpush1.msra.mxu0 0.0
    %785 = vmatprep.subr.mxu0 0.0
    %786 = vmatpush1.msra.mxu0 0.0
    %787 = vmatprep.subr.mxu0 0.0
    %788 = vmatpush1.msra.mxu0 0.0
    %789 = vmatprep.subr.mxu0 0.0
    %790 = vmatpush1.msra.mxu0 0.0
    %791 = vmatprep.subr.mxu0 0.0
    %792 = vmatpush1.msra.mxu0 0.0
    %793 = vmatprep.subr.mxu0 0.0
    %794 = vmatpush1.msra.mxu0 0.0
    %795 = vmatprep.subr.mxu0 0.0
    %796 = vmatpush1.msra.mxu0 0.0
    %797 = vmatprep.subr.mxu0 0.0
    %798 = vmatpush1.msra.mxu0 0.0
    %799 = vmatprep.subr.mxu0 0.0
    %800 = vmatpush1.msra.mxu0 0.0
    %801 = vmatprep.subr.mxu0 0.0
    %802 = vmatpush1.msra.mxu0 0.0
    %803 = vmatprep.subr.mxu0 0.0
    %804 = vmatpush1.msra.mxu0 0.0
    %805 = vmatprep.subr.mxu0 0.0
    %806 = vmatpush1.msra.mxu0 0.0
    %807 = vmatprep.subr.mxu0 0.0
    %808 = vmatpush1.msra.mxu0 0.0
    %809 = vmatprep.subr.mxu0 0.0
    %810 = vmatpush1.msra.mxu0 0.0
    %811 = vmatprep.subr.mxu0 0.0
    %812 = vmatpush1.msra.mxu0 0.0
    %813 = vmatprep.subr.mxu0 0.0
    %814 = vmatpush1.msra.mxu0 0.0
    %815 = vmatprep.subr.mxu0 0.0
    %816 = vmatpush1.msra.mxu0 0.0
    %817 = vmatprep.subr.mxu0 0.0
    %818 = vmatpush1.msra.mxu0 0.0
    %819 = vmatprep.subr.mxu0 0.0
    %820 = vmatpush1.msra.mxu0 0.0
    %821 = vmatprep.subr.mxu0 0.0
    %822 = vmatpush1.msra.mxu0 0.0
    %823 = vmatprep.subr.mxu0 0.0
    %824 = vmatpush1.msra.mxu0 0.0
    %825 = vmatprep.subr.mxu0 0.0
    %826 = vmatpush1.msra.mxu0 0.0
    %827 = vmatprep.subr.mxu0 0.0
    %828 = vmatpush1.msra.mxu0 0.0
    %829 = vmatprep.subr.mxu0 0.0
    %830 = vmatpush1.msra.mxu0 0.0
    %831 = vmatprep.subr.mxu0 0.0
    %832 = vmatpush1.msra.mxu0 0.0
    %833 = vmatprep.mubr.f32.mxu0 0.0
    %834 = vmatmul.mubr.f32.gmra.mrb[0].mxu0 %v767
    %v835 = vpop.f32.mrb[0].mxu0
    %v836 = vadd.f32 0.0, %v835
    %v837 = vpop.f32.mrb[0].mxu0
    %838 = vdwg.mxu0
    %v840 = vrot.slane %v836, 4
    %v842 = vadd.f32 %v128, %v840
    %v843 = vxor.u32 %v842, 2147483648
    %v844 = vmul.f32 %v843, 1.442695
    %v845 = vpow.pop %v844
    %v846 = vadd.f32 %v845, 1.0
    %v847 = vrcp.pop %v846
    %v848 = vmul.f32 1.0, %v847
    %v849 = vtanh.pop %v842
    %v851 = vrot.slane %v756, 6
    %v853 = vmul.f32 %v848, %v851
    %855 = vrot.lane.b32.xlu0 %v849, 64
    %v856 = vpop.permute.xlu0 %855
    %v858 = vmul.f32 %v848, %v856
    %860 = vrot.lane.b32.xlu0 %v858, 32
    %v861 = vpop.permute.xlu0 %860
    %v863 = vadd.f32 %v853, %v861
    %v864 = vtanh.pop %v863
    %866 = vrot.lane.b32.xlu0 %v864, 64
    %v867 = vpop.permute.xlu0 %866
    %v869 = vmul.f32 %v848, %v867
    %v871 = vrot.slane %v869, 4
    %872 = vrot.lane.b32.xlu0 %v871, 32
    %v873 = vpop.permute.xlu0 %872
    %v874 = vsel %vm49, %v873, 0
    %876 = vmatprep.subr.mxu0 0.0
    %877 = vmatpush1.msra.mxu0 %v131
    %878 = vmatprep.subr.mxu0 0.0
    %879 = vmatpush1.msra.mxu0 %v132
    %880 = vmatprep.subr.mxu0 0.0
    %881 = vmatpush1.msra.mxu0 %v133
    %882 = vmatprep.subr.mxu0 0.0
    %883 = vmatpush1.msra.mxu0 %v134
    %884 = vmatprep.subr.mxu0 0.0
    %885 = vmatpush1.msra.mxu0 0.0
    %886 = vmatprep.subr.mxu0 0.0
    %887 = vmatpush1.msra.mxu0 0.0
    %888 = vmatprep.subr.mxu0 0.0
    %889 = vmatpush1.msra.mxu0 0.0
    %890 = vmatprep.subr.mxu0 0.0
    %891 = vmatpush1.msra.mxu0 0.0
    %892 = vmatprep.subr.mxu0 0.0
    %893 = vmatpush1.msra.mxu0 0.0
    %894 = vmatprep.subr.mxu0 0.0
    %895 = vmatpush1.msra.mxu0 0.0
    %896 = vmatprep.subr.mxu0 0.0
    %897 = vmatpush1.msra.mxu0 0.0
    %898 = vmatprep.subr.mxu0 0.0
    %899 = vmatpush1.msra.mxu0 0.0
    %900 = vmatprep.subr.mxu0 0.0
    %901 = vmatpush1.msra.mxu0 0.0
    %902 = vmatprep.subr.mxu0 0.0
    %903 = vmatpush1.msra.mxu0 0.0
    %904 = vmatprep.subr.mxu0 0.0
    %905 = vmatpush1.msra.mxu0 0.0
    %906 = vmatprep.subr.mxu0 0.0
    %907 = vmatpush1.msra.mxu0 0.0
    %908 = vmatprep.subr.mxu0 0.0
    %909 = vmatpush1.msra.mxu0 0.0
    %910 = vmatprep.subr.mxu0 0.0
    %911 = vmatpush1.msra.mxu0 0.0
    %912 = vmatprep.subr.mxu0 0.0
    %913 = vmatpush1.msra.mxu0 0.0
    %914 = vmatprep.subr.mxu0 0.0
    %915 = vmatpush1.msra.mxu0 0.0
    %916 = vmatprep.subr.mxu0 0.0
    %917 = vmatpush1.msra.mxu0 0.0
    %918 = vmatprep.subr.mxu0 0.0
    %919 = vmatpush1.msra.mxu0 0.0
    %920 = vmatprep.subr.mxu0 0.0
    %921 = vmatpush1.msra.mxu0 0.0
    %922 = vmatprep.subr.mxu0 0.0
    %923 = vmatpush1.msra.mxu0 0.0
    %924 = vmatprep.subr.mxu0 0.0
    %925 = vmatpush1.msra.mxu0 0.0
    %926 = vmatprep.subr.mxu0 0.0
    %927 = vmatpush1.msra.mxu0 0.0
    %928 = vmatprep.subr.mxu0 0.0
    %929 = vmatpush1.msra.mxu0 0.0
    %930 = vmatprep.subr.mxu0 0.0
    %931 = vmatpush1.msra.mxu0 0.0
    %932 = vmatprep.subr.mxu0 0.0
    %933 = vmatpush1.msra.mxu0 0.0
    %934 = vmatprep.subr.mxu0 0.0
    %935 = vmatpush1.msra.mxu0 0.0
    %936 = vmatprep.subr.mxu0 0.0
    %937 = vmatpush1.msra.mxu0 0.0
    %938 = vmatprep.subr.mxu0 0.0
    %939 = vmatpush1.msra.mxu0 0.0
    %940 = vmatprep.mubr.f32.mxu0 0.0
    %941 = vmatmul.mubr.f32.gmra.mrb[0].mxu0 %v874
    %v942 = vpop.f32.mrb[0].mxu0
    %v943 = vadd.f32 0.0, %v942
    %v944 = vpop.f32.mrb[0].mxu0
    %945 = vdwg.mxu0
    %v947 = vrot.slane %v943, 2
    %v949 = vadd.f32 %v128, %v947
    %v950 = vxor.u32 %v949, 2147483648
    %v951 = vmul.f32 %v950, 1.442695
    %v952 = vpow.pop %v951
    %v953 = vadd.f32 %v952, 1.0
    %v954 = vrcp.pop %v953
    %v955 = vmul.f32 1.0, %v954
    %v956 = vtanh.pop %v949
    %v958 = vrot.slane %v863, 6
    %v960 = vmul.f32 %v955, %v958
    %962 = vrot.lane.b32.xlu0 %v956, 64
    %v963 = vpop.permute.xlu0 %962
    %v965 = vmul.f32 %v955, %v963
    %967 = vrot.lane.b32.xlu0 %v965, 32
    %v968 = vpop.permute.xlu0 %967
    %v970 = vadd.f32 %v960, %v968
    %v971 = vtanh.pop %v970
    %973 = vrot.lane.b32.xlu0 %v971, 64
    %v974 = vpop.permute.xlu0 %973
    %v976 = vmul.f32 %v955, %v974
    %978 = vrot.lane.b32.xlu0 %v340, 64
    %v979 = vpop.permute.xlu0 %978
    %981 = vrot.lane.b32.xlu0 %v447, 96
    %v982 = vpop.permute.xlu0 %981
    %986 = vrot.lane.b32.xlu0 %v764, 64
    %v987 = vpop.permute.xlu0 %986
    %989 = vrot.lane.b32.xlu0 %v871, 96
    %v990 = vpop.permute.xlu0 %989
    %v993 = vrot.slane %v976, 6
    %v995 = vsel %vm49, %v235, %v979
    %vm996 = vcmask 523264
    %v997 = vsel %vm996, %v995, %v982
    %vm998 = vcmask 785408
    %v999 = vsel %vm998, %v997, %v554
    %v1000 = vsel %vm49, %v659, %v987
    %v1001 = vsel %vm996, %v1000, %v990
    %v1002 = vsel %vm998, %v1001, %v993
    %v1005 = vcombine.low %v999, %v1002
    %v1007 = vunpack.c.l.s4 1983009808
    %v1008 = vunpack.c.0.s8 %v1007
    %v1009 = vlaneseq
    %v1010 = vshrl.u32 %v1009, 7
    %v1011 = vsub.s32 %v1008, %v1010
    %v1012 = vrot.slane %v1005, %v1011
    %1014 = vst [vmem:[%s4] sm:$0xf] %v1012
    %1015 = vrot.lane.b32.xlu0 %v976, 32
    %v1016 = vpop.permute.xlu0 %1015
    %vm1018 = vcmask 261126
    %1019 = vst.msk [vmem:[#allocation5 - $0x6] sm:$0xc0] %vm1018, %v1016
    %1021 = vrot.lane.b32.xlu0 %v970, 96
    %v1022 = vpop.permute.xlu0 %1021
    %1024 = vst.msk [vmem:[#allocation6 - $0x6] sm:$0xc0] %vm1018, %v1022
    // Predicated region
    $region22: #{decoder_rnn_forward.1} parent=1 // pred_check
      _
    $region23: #{decoder_rnn_forward.1} parent=1 // pred_check_branch
      %1026 = sbr.rel (0) target = $region25
    $region24: #{decoder_rnn_forward.1} parent=1 // pred_region
      _
    $region25: #{decoder_rnn_forward.1} parent=1 // pred_fallthru
      _
    // Predicated region
    $region26: #{decoder_rnn_forward.1} parent=1 // pred_check
      _
    $region27: #{decoder_rnn_forward.1} parent=1 // pred_check_branch
      %1028 = sbr.rel (0) target = $region29
    $region28: #{decoder_rnn_forward.1} parent=1 // pred_region
      %s1030 = ssub.s32 32, 32
      %1031 = vsyncadd [#allocation4], %s1030
      %s1033 = sshll.u32 [#allocation5], 4
      %s1034 = int_to_ptr.vmem [resolvable:$true] %s1033
      %1036 = dma.vmem_to_hbm [thread:$0]  %s1034, 32, %s5, [#allocation4]
    $region29: #{decoder_rnn_forward.1} parent=1 // pred_fallthru
      _
    // Predicated region
    $region30: #{decoder_rnn_forward.1} parent=1 // pred_check
      _
    $region31: #{decoder_rnn_forward.1} parent=1 // pred_check_branch
      %1038 = sbr.rel (0) target = $region33
    $region32: #{decoder_rnn_forward.1} parent=1 // pred_region
      %s1040 = ssub.s32 32, 32
      %1041 = vsyncadd [#allocation7], %s1040
      %s1043 = sshll.u32 [#allocation6], 4
      %s1044 = int_to_ptr.vmem [resolvable:$true] %s1043
      %1046 = dma.vmem_to_hbm [thread:$0]  %s1044, 32, %s6, [#allocation7]
    $region33: #{decoder_rnn_forward.1} parent=1 // pred_fallthru
      _
    // Predicated region
    $region34: #{decoder_rnn_forward.1} parent=1 // pred_check
      _
    $region35: #{decoder_rnn_forward.1} parent=1 // pred_check_branch
      %1048 = sbr.rel (0) target = $region37
    $region36: #{decoder_rnn_forward.1} parent=1 // pred_region
      _
    $region37: #{decoder_rnn_forward.1} parent=1 // pred_fallthru
      _
    // Predicated region
    $region38: #{decoder_rnn_forward.1} parent=1 // pred_check
      _
    $region39: #{decoder_rnn_forward.1} parent=1 // pred_check_branch
      %1050 = sbr.rel (0) target = $region41
    $region40: #{decoder_rnn_forward.1} parent=1 // pred_region
      %1051 = dma.done [#allocation4], 32
    $region41: #{decoder_rnn_forward.1} parent=1 // pred_fallthru
      _
    // Predicated region
    $region42: #{decoder_rnn_forward.1} parent=1 // pred_check
      _
    $region43: #{decoder_rnn_forward.1} parent=1 // pred_check_branch
      %1053 = sbr.rel (0) target = $region45
    $region44: #{decoder_rnn_forward.1} parent=1 // pred_region
      %1054 = dma.done [#allocation7], 32
    $region45: #{decoder_rnn_forward.1} parent=1 // pred_fallthru
      _
    %1055 = vsyncpa [#allocation3], 1
    %1056 = vsyncpa [#allocation4], 1
    %1057 = vsyncpa [#allocation7], 1

</llo_original>
